<compile_context>
chip_gen: v6e
topology: v6e:2x2x1
jax: 0.10.0
libtpu: 0.0.40
codegen_flags: <defaults>
</compile_context>

<pallas_src>
import jax
import jax.numpy as jnp
from jax.experimental import pallas as pl
from jax.experimental.pallas import tpu as pltpu


def fused_matvec_kernel(x_ref, w_ref, o_ref):
    # x_ref: (TR, L) tile of (lane-packed) inputs
    # w_ref: (L, G)  fused, VMEM-resident weight
    # o_ref: (TR, G) output tile
    # Canonical (M, K) @ (K, N) form -> straight to the MXU, no transpose.
    o_ref[...] = jnp.dot(
        x_ref[...], w_ref[...], preferred_element_type=jnp.float32
    ).astype(o_ref.dtype)


def _round_up(a, m):
    return ((a + m - 1) // m) * m


def my_model_forward(x, w1, b1, w2, b2):
    """x: (B, D) float32. Returns (B,) float32 — matches My_Model.forward."""
    B, D = x.shape

    # Fuse the two affine layers once, outside the kernel.
    w_eff = (w1 @ w2).astype(jnp.float32)       # (D, 1)
    b_eff = (b1 @ w2 + b2).reshape(())          # scalar

    # ---- choose the kernel-facing layout --------------------------------------
    if D <= 128 and 128 % D == 0 and B > 0 and B % (128 // D) == 0:
        # Lane-dense path: free contiguous reshape, G input rows per 128-lane row.
        G = 128 // D
        L = 128
        xk = x.reshape(B // G, L)               # no copy: contiguous row-major reshape
        # Block-structured weight: W'[g'*D + d, g] = (g' == g) * w_eff[d]
        wk = (jnp.eye(G, dtype=jnp.float32)[:, None, :]
              * w_eff.reshape(1, D, 1)).reshape(L, G)
    else:
        # Generic fallback (B % G != 0 or D does not divide 128). Same HBM traffic.
        G = 1
        L = D
        xk = x
        wk = w_eff                              # (D, 1)

    R = xk.shape[0]                             # rows fed to the kernel

    # ---- VMEM-budget-driven tile size -----------------------------------------
    lane_padded = max(_round_up(L, 128), 128)               # VMEM lane padding
    bytes_per_row = lane_padded * 4                         # f32
    budget_rows = max(8, ((4 * 1024 * 1024) // bytes_per_row) // 8 * 8)  # ~4 MiB/buffer
    # >= 2 grid steps whenever possible so v7x's 2 TCs both stream HBM.
    TR = min(budget_rows, _round_up(pl.cdiv(R, 2), 8))
    if TR >= R:
        TR = R                                  # single full block (always legal)
    grid = (pl.cdiv(R, TR),)                    # partial boundary block, no padding

    out = pl.pallas_call(
        fused_matvec_kernel,
        out_shape=jax.ShapeDtypeStruct((R, G), jnp.float32),
        grid=grid,
        in_specs=[
            pl.BlockSpec((TR, L), lambda i: (i, 0)),   # x tile marches over the batch
            pl.BlockSpec((L, G), lambda i: (0, 0)),    # fused weight stays resident
        ],
        out_specs=pl.BlockSpec((TR, G), lambda i: (i, 0)),
        compiler_params=pltpu.CompilerParams(
            dimension_semantics=("parallel",),          # shard batch across TCs on v7x
            vmem_limit_bytes=32 * 1024 * 1024,          # safe on v5e/v6e/v7x
        ),
    )(xk, wk)

    # (R, G) flattens row-major back to original row order; add the scalar bias here.
    return out.reshape(B) + b_eff


def init_params(key, input_dim, hidden=24, out_dim=1):
    # Deterministic init mimicking PyTorch nn.Linear default U(-1/sqrt(fan_in), 1/sqrt(fan_in)).
    k1, k2, k3, k4 = jax.random.split(key, 4)
    bound1 = 1.0 / (input_dim ** 0.5)
    bound2 = 1.0 / (hidden ** 0.5)
    # Stored as (in, out) == transposed PyTorch layout.
    w1 = jax.random.uniform(k1, (input_dim, hidden), jnp.float32, -bound1, bound1)
    b1 = jax.random.uniform(k2, (1, hidden), jnp.float32, -bound1, bound1)
    w2 = jax.random.uniform(k3, (hidden, out_dim), jnp.float32, -bound2, bound2)
    b2 = jax.random.uniform(k4, (1, out_dim), jnp.float32, -bound2, bound2)
    return w1, b1, w2, b2


if __name__ == "__main__":
    root = jax.random.PRNGKey(0)

    # Configs exercise: packed path exact-fit (32, 8), packed path with a partial
    # boundary block and a 2-step grid (32, 300), generic path via B % 4 != 0
    # (32, 10), and generic path via D not dividing 128 (117, 64).
    configs = [(32, 8), (32, 300), (32, 10), (117, 64)]

    for idx, (input_dim, batch) in enumerate(configs):
        k_p, k_x = jax.random.split(jax.random.fold_in(root, idx))
        w1, b1, w2, b2 = init_params(k_p, input_dim)
        x = jax.random.normal(k_x, (batch, input_dim), jnp.float32)

        y = jax.block_until_ready(my_model_forward(x, w1, b1, w2, b2))

        # Reference in plain JAX (unfused order, matching the PyTorch module).
        ref = ((x @ w1 + b1) @ w2 + b2)[:, 0]
        assert y.shape == (batch,), (y.shape, batch)
        assert jnp.allclose(y, ref, atol=1e-4, rtol=1e-4), float(
            jnp.max(jnp.abs(y - ref))
        )

    print("KERNEL_OK")
</pallas_src>

<mosaic_0001>
module attributes {stable_mosaic.version = 11 : i64} {
  func.func @fused_matvec_kernel(%arg0: i32, %arg1: memref<2x128xf32, #tpu.memory_space<vmem>>, %arg2: memref<128x4xf32, #tpu.memory_space<vmem>>, %arg3: memref<2x4xf32, #tpu.memory_space<vmem>>) attributes {dimension_semantics = [#tpu.dimension_semantics<parallel>], iteration_bounds = array<i64: 1>, scalar_prefetch = 0 : i64, scratch_operands = 0 : i64, tpu.core_type = #tpu.core_type<tc>, window_params = [{transform_indices = @transform_0, window_bounds = array<i64: 2, 128>}, {pipeline_mode = #tpu.pipeline_mode<synchronous>, transform_indices = @transform_1, window_bounds = array<i64: 128, 4>}, {transform_indices = @transform_2, window_bounds = array<i64: 2, 4>}]} {
    %c0 = arith.constant 0 : index
    %c0_0 = arith.constant 0 : index
    %0 = vector.load %arg1[%c0, %c0_0] : memref<2x128xf32, #tpu.memory_space<vmem>>, vector<2x128xf32>
    %c0_1 = arith.constant 0 : index
    %c0_2 = arith.constant 0 : index
    %1 = vector.load %arg2[%c0_1, %c0_2] : memref<128x4xf32, #tpu.memory_space<vmem>>, vector<128x4xf32>
    %cst = arith.constant dense<0.000000e+00> : vector<2x4xf32>
    %2 = tpu.matmul %0, %1, %cst {dimension_numbers = #tpu.dot_dimension_numbers<[1], [0], [0], [1], [0, 0, 1, 1], [], []>} : vector<2x128xf32>, vector<128x4xf32>, vector<2x4xf32> -> vector<2x4xf32>
    %c0_3 = arith.constant 0 : index
    %c0_4 = arith.constant 0 : index
    %3 = vector.load %arg3[%c0_3, %c0_4] : memref<2x4xf32, #tpu.memory_space<vmem>>, vector<2x4xf32>
    tpu.vector_store %arg3[%c0_3, %c0_4], %2 {strides = array<i32>} : memref<2x4xf32, #tpu.memory_space<vmem>>, vector<2x4xf32>,
    return
  }
  func.func @transform_0(%arg0: i32) -> (i32, i32) {
    %c0_i32 = arith.constant 0 : i32
    %c0_i32_0 = arith.constant 0 : i32
    return %arg0, %c0_i32 : i32, i32
  }
  func.func @transform_1(%arg0: i32) -> (i32, i32) {
    %c0_i32 = arith.constant 0 : i32
    %c0_i32_0 = arith.constant 0 : i32
    %c0_i32_1 = arith.constant 0 : i32
    return %c0_i32, %c0_i32_0 : i32, i32
  }
  func.func @transform_2(%arg0: i32) -> (i32, i32) {
    %c0_i32 = arith.constant 0 : i32
    %c0_i32_0 = arith.constant 0 : i32
    return %arg0, %c0_i32 : i32, i32
  }
}

</mosaic_0001>

<llo_original>
// kernel: tpu_custom_call.1
$region0: #{tpu_custom_call.1}
  #allocation0 [shape = 'u32[]', space=smem, size = 0x4, offset = 0x4, fixed_abs, tag = 'smem constant byte address 0x4 - core index']
  #allocation1 [shape = 'u32[144,128]{1,0:T(1,128)}', space=vmem, size = 0x12000, scoped, tag = 'internal scratch']
  %s0 = inlined_call_operand.vmem [shape: f32[2,128], index: 0, kind: input, shape index: {}]
  %s1 = inlined_call_operand.vmem [shape: f32[128,4], index: 1, kind: input, shape index: {}]
  %s2 = inlined_call_operand.hbm [shape: f32[2,4], index: 2, kind: output, shape index: {}]
  %s3 = sld [smem:[#allocation0]]
  $region18: #{tpu_custom_call.1} parent=0
    _
  %s5 = ssub.s32 1, %s3
  %s6 = scalar_select 0, %s5, %s3
  $region1: #{tpu_custom_call.1} parent=0
    #allocation2 [shape = 'u8[1024]{0}', space=vmem, size = 0x400, scoped, tag = 'output window, operand 0, single buffered']
    #allocation3 [shape = 's32[1]{0}', space=sflag, size = 0x4, scoped, tag = 'scoped memory for tpu_custom_call.1']
    %7 = vsyncpa [#allocation3], 0
    // Predicated region
    $region2: #{tpu_custom_call.1} parent=1 // pred_check
      _
    $region3: #{tpu_custom_call.1} parent=1 // pred_check_branch
      %9 = sbr.rel (0) target = $region5
    $region4: #{tpu_custom_call.1} parent=1 // pred_region
      _
    $region5: #{tpu_custom_call.1} parent=1 // pred_fallthru
      _
    // Predicated region
    $region6: #{tpu_custom_call.1} parent=1 // pred_check
      _
    $region7: #{tpu_custom_call.1} parent=1 // pred_check_branch
      %11 = sbr.rel (0) target = $region9
    $region8: #{tpu_custom_call.1} parent=1 // pred_region
      _
    $region9: #{tpu_custom_call.1} parent=1 // pred_fallthru
      _
    %v12 = vld [vmem:[%s0] sm:$0x3]
    %v13 = vld [vmem:[%s1] sm:$0xff]
    %v14 = vld [vmem:[%s1 + $0x8] sm:$0xff]
    %v15 = vld [vmem:[%s1 + $0x10] sm:$0xff]
    %v16 = vld [vmem:[%s1 + $0x18] sm:$0xff]
    %v17 = vld [vmem:[%s1 + $0x20] sm:$0xff]
    %v18 = vld [vmem:[%s1 + $0x28] sm:$0xff]
    %v19 = vld [vmem:[%s1 + $0x30] sm:$0xff]
    %v20 = vld [vmem:[%s1 + $0x38] sm:$0xff]
    %v21 = vld [vmem:[%s1 + $0x40] sm:$0xff]
    %v22 = vld [vmem:[%s1 + $0x48] sm:$0xff]
    %v23 = vld [vmem:[%s1 + $0x50] sm:$0xff]
    %v24 = vld [vmem:[%s1 + $0x58] sm:$0xff]
    %v25 = vld [vmem:[%s1 + $0x60] sm:$0xff]
    %v26 = vld [vmem:[%s1 + $0x68] sm:$0xff]
    %v27 = vld [vmem:[%s1 + $0x70] sm:$0xff]
    %v28 = vld [vmem:[%s1 + $0x78] sm:$0xff]
    %29 = vmatprep.subr.mxu0 0.0
    %30 = vmatpush1.msra.mxu0 %v28
    %31 = vmatprep.subr.mxu0 0.0
    %32 = vmatpush1.msra.mxu0 %v27
    %33 = vmatprep.subr.mxu0 0.0
    %34 = vmatpush1.msra.mxu0 %v26
    %35 = vmatprep.subr.mxu0 0.0
    %36 = vmatpush1.msra.mxu0 %v25
    %37 = vmatprep.subr.mxu0 0.0
    %38 = vmatpush1.msra.mxu0 %v24
    %39 = vmatprep.subr.mxu0 0.0
    %40 = vmatpush1.msra.mxu0 %v23
    %41 = vmatprep.subr.mxu0 0.0
    %42 = vmatpush1.msra.mxu0 %v22
    %43 = vmatprep.subr.mxu0 0.0
    %44 = vmatpush1.msra.mxu0 %v21
    %45 = vmatprep.subr.mxu0 0.0
    %46 = vmatpush1.msra.mxu0 %v20
    %47 = vmatprep.subr.mxu0 0.0
    %48 = vmatpush1.msra.mxu0 %v19
    %49 = vmatprep.subr.mxu0 0.0
    %50 = vmatpush1.msra.mxu0 %v18
    %51 = vmatprep.subr.mxu0 0.0
    %52 = vmatpush1.msra.mxu0 %v17
    %53 = vmatprep.subr.mxu0 0.0
    %54 = vmatpush1.msra.mxu0 %v16
    %55 = vmatprep.subr.mxu0 0.0
    %56 = vmatpush1.msra.mxu0 %v15
    %57 = vmatprep.subr.mxu0 0.0
    %58 = vmatpush1.msra.mxu0 %v14
    %59 = vmatprep.subr.mxu0 0.0
    %60 = vmatpush1.msra.mxu0 %v13
    %61 = vmatprep.subr.mxu0 0.0
    %62 = vmatpush2.msra.mxu0 0.0
    %63 = vmatprep.subr.mxu0 0.0
    %64 = vmatpush2.msra.mxu0 0.0
    %65 = vmatprep.subr.mxu0 0.0
    %66 = vmatpush2.msra.mxu0 0.0
    %67 = vmatprep.subr.mxu0 0.0
    %68 = vmatpush2.msra.mxu0 0.0
    %69 = vmatprep.subr.mxu0 0.0
    %70 = vmatpush2.msra.mxu0 0.0
    %71 = vmatprep.subr.mxu0 0.0
    %72 = vmatpush2.msra.mxu0 0.0
    %73 = vmatprep.subr.mxu0 0.0
    %74 = vmatpush2.msra.mxu0 0.0
    %75 = vmatprep.subr.mxu0 0.0
    %76 = vmatpush2.msra.mxu0 0.0
    %77 = vmatprep.subr.mxu0 0.0
    %78 = vmatpush2.msra.mxu0 0.0
    %79 = vmatprep.subr.mxu0 0.0
    %80 = vmatpush2.msra.mxu0 0.0
    %81 = vmatprep.subr.mxu0 0.0
    %82 = vmatpush2.msra.mxu0 0.0
    %83 = vmatprep.subr.mxu0 0.0
    %84 = vmatpush2.msra.mxu0 0.0
    %85 = vmatprep.subr.mxu0 0.0
    %86 = vmatpush2.msra.mxu0 0.0
    %87 = vmatprep.subr.mxu0 0.0
    %88 = vmatpush2.msra.mxu0 0.0
    %89 = vmatprep.subr.mxu0 0.0
    %90 = vmatpush2.msra.mxu0 0.0
    %91 = vmatprep.subr.mxu0 0.0
    %92 = vmatpush2.msra.mxu0 0.0
    %93 = vmatprep.mubr.f32.mxu0 0.0
    %94 = vmatmul.mubr.f32.gmra.mxu0 %v12
    %v95 = vpop.f32.mrf.mxu0
    %v96 = vadd.f32 0.0, %v95
    %v97 = vpop.f32.mrf.mxu0
    %98 = vdwg.mxu0
    %vm99 = vcmask 25600
    %100 = vst.msk [vmem:[#allocation2] sm:$0x3] %vm99, %v96
    // Predicated region
    $region10: #{tpu_custom_call.1} parent=1 // pred_check
      _
    $region11: #{tpu_custom_call.1} parent=1 // pred_check_branch
      %102 = sbr.rel (0) target = $region13
    $region12: #{tpu_custom_call.1} parent=1 // pred_region
      %s104 = ssub.s32 32, 32
      %105 = vsyncadd [#allocation3], %s104
      %s107 = sshll.u32 [#allocation2], 4
      %s108 = int_to_ptr.vmem [resolvable:$true] %s107
      %110 = dma.vmem_to_hbm [thread:$0]  %s108, 32, %s2, [#allocation3]
    $region13: #{tpu_custom_call.1} parent=1 // pred_fallthru
      _
    // Predicated region
    $region14: #{tpu_custom_call.1} parent=1 // pred_check
      _
    $region15: #{tpu_custom_call.1} parent=1 // pred_check_branch
      %112 = sbr.rel (0) target = $region17
    $region16: #{tpu_custom_call.1} parent=1 // pred_region
      %113 = dma.done [#allocation3], 32
    $region17: #{tpu_custom_call.1} parent=1 // pred_fallthru
      _
    %114 = vsyncpa [#allocation3], 1

</llo_original>
